<compile_context>
chip_gen: v7x
topology: tpu7x:2x2x1
jax: 0.10.0
libtpu: 0.0.40
codegen_flags: <defaults>
</compile_context>

<pallas_src>
import jax
import jax.numpy as jnp
from jax.experimental import pallas as pl
from jax.experimental.pallas import tpu as pltpu

N_INPUT = 12
LAYER_SIZES = [N_INPUT, 512, 256, 128, 64, 32, 1]

# Stored (padded) weight shapes: fc4 out 64->128, fc5 in 64->128 / out 32->128,
# fc6 in 32->128.  Padded rows/columns are zero, so padded lanes stay exactly 0 through
# the bias add, ReLU and the next matmul (zero rows in the following weight).
PADDED_IN  = [N_INPUT, 512, 256, 128, 128, 128]
PADDED_OUT = [512, 256, 128, 128, 128, 1]

# Packed-bias layout: 128-aligned segments inside a single (1, 1280) f32 row.
BIAS_PAD  = [512, 256, 128, 128, 128, 128]
BIAS_OFFS = [0, 512, 768, 896, 1024, 1152]
BIAS_TOTAL = sum(BIAS_PAD)  # 1280


def _round_up(x, m):
    return (x + m - 1) // m * m


def _cdiv(a, b):
    return (a + b - 1) // b


def mlp_kernel(x_ref, w1, w2, w3, w4, w5, w6, b_ref, o_ref):
    # x_ref: (TB, 12) bf16.  w*: bf16 [in, out] (lane-padded as described above).
    # b_ref: (1, 1280) f32 packed biases.  o_ref: (TB, 1) f32.
    # Feature dims are NOT tiled on purpose: every matmul is far below one MXU tile and
    # the kernel is DMA/overhead bound, so only the batch dim is gridded and all weights
    # stay resident in VMEM (constant index_map).
    h = x_ref[...]

    def hidden(h, w_ref, idx):
        off, width = BIAS_OFFS[idx], w_ref.shape[1]
        y = jnp.dot(h, w_ref[...], preferred_element_type=jnp.float32)
        y = y + b_ref[:, off:off + width]
        # ReLU (dropout = identity at inference); bf16 feeds the next MXU pass.
        return jnp.maximum(y, 0.0).astype(jnp.bfloat16)

    h = hidden(h, w1, 0)   # fc1 + ReLU
    h = hidden(h, w2, 1)   # fc2 + ReLU
    h = hidden(h, w3, 2)   # fc3 + ReLU
    h = hidden(h, w4, 3)   # fc4 + ReLU (out lane-padded to 128)
    h = hidden(h, w5, 4)   # fc5 + ReLU (out lane-padded to 128)
    # fc6: single output column, no activation.  Storing a (TB, 1) f32 column keeps HBM
    # writeback at 4 B/row instead of 512 B/row for a 128-lane padded slab.
    y = jnp.dot(h, w6[...], preferred_element_type=jnp.float32)
    o_ref[...] = (y + b_ref[:, BIAS_OFFS[5]:BIAS_OFFS[5] + 1]).astype(o_ref.dtype)
    # TODO(synk): training-mode dropout (p=0.3) not implemented; eval semantics only.


def init_params(key):
    """PyTorch-style uniform init for each nn.Linear.  Returns [w1..w6, bias_pack]:
    bf16 weights stored [in, out] with zero padding to the PADDED_IN/PADDED_OUT shapes,
    and a single (1, 1280) f32 packed bias row with 128-aligned segments."""
    weights, bias_segs = [], []
    for i in range(6):
        fan_in, fan_out = LAYER_SIZES[i], LAYER_SIZES[i + 1]
        key, kw, kb = jax.random.split(key, 3)
        bound = 1.0 / (fan_in ** 0.5)
        w = jax.random.uniform(kw, (fan_in, fan_out), jnp.float32, -bound, bound)
        b = jax.random.uniform(kb, (1, fan_out), jnp.float32, -bound, bound)
        w = jnp.pad(w, ((0, PADDED_IN[i] - fan_in), (0, PADDED_OUT[i] - fan_out)))
        weights.append(w.astype(jnp.bfloat16))
        bias_segs.append(jnp.pad(b, ((0, 0), (0, BIAS_PAD[i] - fan_out))))
    return weights + [jnp.concatenate(bias_segs, axis=1)]  # (1, 1280) f32


def _tpu_defaults():
    """Generation-gated (max batch tile, scoped VMEM limit).
    v5e / v6e: 128 MiB physical VMEM, single TensorCore -> big tiles + raised limit.
    v7x (64 MiB per TC) and unknown chips: conservative sizing."""
    kind = ""
    try:
        kind = jax.devices()[0].device_kind.lower()
    except Exception:
        pass
    if ("v5 lite" in kind) or ("v5e" in kind) or ("v6" in kind):
        return 8192, 96 * 1024 * 1024
    return 4096, 48 * 1024 * 1024


def mlp_forward(x, params):
    *weights, bias = params
    B = x.shape[0]
    tb_max, vmem_limit = _tpu_defaults()

    # Batch tiling: at least 2 tiles whenever there is enough work (B >= 16) so the
    # "parallel" grid axis actually feeds both v7x TensorCores, and the tile size is
    # derived from B so worst-case padding waste stays < n_tiles * 8 rows.
    b8 = _round_up(max(B, 1), 8)
    n_tiles = max(_cdiv(b8, tb_max), 2 if b8 >= 16 else 1)
    TB = _round_up(_cdiv(b8, n_tiles), 8)
    B_pad = TB * n_tiles
    if B_pad != B:
        x = jnp.pad(x, ((0, B_pad - B), (0, 0)))
    x = x.astype(jnp.bfloat16)

    resident = lambda i: (0, 0)  # same block index every step -> weights stay in VMEM
    in_specs = [pl.BlockSpec((TB, N_INPUT), lambda i: (i, 0))]
    in_specs += [pl.BlockSpec(w.shape, resident) for w in weights]
    in_specs += [pl.BlockSpec(bias.shape, resident)]

    flops = 2 * B_pad * sum(LAYER_SIZES[i] * LAYER_SIZES[i + 1] for i in range(6))
    bytes_accessed = (x.size * 2 + sum(w.size * 2 for w in weights)
                      + bias.size * 4 + B_pad * 4)

    out = pl.pallas_call(
        mlp_kernel,
        out_shape=jax.ShapeDtypeStruct((B_pad, 1), jnp.float32),
        grid=(n_tiles,),
        in_specs=in_specs,
        out_specs=pl.BlockSpec((TB, 1), lambda i: (i, 0)),
        compiler_params=pltpu.CompilerParams(
            dimension_semantics=("parallel",),  # batch tiles shard across v7x's 2 TCs
            vmem_limit_bytes=vmem_limit,
        ),
        cost_estimate=pl.CostEstimate(
            flops=flops, transcendentals=0, bytes_accessed=bytes_accessed),
    )(x, *weights, bias)
    return out if B_pad == B else out[:B]


def mlp_forward_ref(x, params):
    """Pure-JAX reference mimicking the kernel's bf16/f32 arithmetic."""
    *weights, bias = params
    h = x.astype(jnp.bfloat16)
    for i in range(5):
        off, width = BIAS_OFFS[i], weights[i].shape[1]
        y = (jnp.dot(h, weights[i], preferred_element_type=jnp.float32)
             + bias[:, off:off + width])
        h = jnp.maximum(y, 0.0).astype(jnp.bfloat16)
    return (jnp.dot(h, weights[5], preferred_element_type=jnp.float32)
            + bias[:, BIAS_OFFS[5]:BIAS_OFFS[5] + 1])


if __name__ == "__main__":
    key = jax.random.PRNGKey(0)
    key, kx = jax.random.split(key)
    B = 8
    x = jax.random.normal(kx, (B, N_INPUT), jnp.float32)
    params = init_params(key)

    out = jax.block_until_ready(mlp_forward(x, params))
    ref = mlp_forward_ref(x, params)
    assert out.shape == (B, 1), out.shape
    assert jnp.allclose(out, ref, atol=1e-2, rtol=1e-2)
    print("KERNEL_OK")
</pallas_src>

<mosaic_0001>
module attributes {stable_mosaic.version = 11 : i64} {
  func.func @mlp_kernel(%arg0: i32, %arg1: memref<8x12xbf16, #tpu.memory_space<vmem>>, %arg2: memref<12x512xbf16, #tpu.memory_space<vmem>>, %arg3: memref<512x256xbf16, #tpu.memory_space<vmem>>, %arg4: memref<256x128xbf16, #tpu.memory_space<vmem>>, %arg5: memref<128x128xbf16, #tpu.memory_space<vmem>>, %arg6: memref<128x128xbf16, #tpu.memory_space<vmem>>, %arg7: memref<128x1xbf16, #tpu.memory_space<vmem>>, %arg8: memref<1x1280xf32, #tpu.memory_space<vmem>>, %arg9: memref<8x1xf32, #tpu.memory_space<vmem>>) attributes {dimension_semantics = [#tpu.dimension_semantics<parallel>], iteration_bounds = array<i64: 1>, scalar_prefetch = 0 : i64, scratch_operands = 0 : i64, tpu.core_type = #tpu.core_type<tc>, window_params = [{transform_indices = @transform_0, window_bounds = array<i64: 8, 12>}, {pipeline_mode = #tpu.pipeline_mode<synchronous>, transform_indices = @transform_1, window_bounds = array<i64: 12, 512>}, {pipeline_mode = #tpu.pipeline_mode<synchronous>, transform_indices = @transform_2, window_bounds = array<i64: 512, 256>}, {pipeline_mode = #tpu.pipeline_mode<synchronous>, transform_indices = @transform_3, window_bounds = array<i64: 256, 128>}, {pipeline_mode = #tpu.pipeline_mode<synchronous>, transform_indices = @transform_4, window_bounds = array<i64: 128, 128>}, {pipeline_mode = #tpu.pipeline_mode<synchronous>, transform_indices = @transform_5, window_bounds = array<i64: 128, 128>}, {pipeline_mode = #tpu.pipeline_mode<synchronous>, transform_indices = @transform_6, window_bounds = array<i64: 128, 1>}, {pipeline_mode = #tpu.pipeline_mode<synchronous>, transform_indices = @transform_7, window_bounds = array<i64: 1, 1280>}, {transform_indices = @transform_8, window_bounds = array<i64: 8, 1>}]} {
    %c0 = arith.constant 0 : index
    %c0_0 = arith.constant 0 : index
    %0 = vector.load %arg1[%c0, %c0_0] : memref<8x12xbf16, #tpu.memory_space<vmem>>, vector<8x12xbf16>
    %c0_1 = arith.constant 0 : index
    %c0_2 = arith.constant 0 : index
    %1 = vector.load %arg2[%c0_1, %c0_2] : memref<12x512xbf16, #tpu.memory_space<vmem>>, vector<12x512xbf16>
    %cst = arith.constant dense<0.000000e+00> : vector<8x512xf32>
    %2 = tpu.matmul %0, %1, %cst {dimension_numbers = #tpu.dot_dimension_numbers<[1], [0], [0], [1], [0, 0, 1, 1], [], []>} : vector<8x12xbf16>, vector<12x512xbf16>, vector<8x512xf32> -> vector<8x512xf32>
    %c0_3 = arith.constant 0 : index
    %c0_4 = arith.constant 0 : index
    %3 = vector.load %arg8[%c0_3, %c0_4] : memref<1x1280xf32, #tpu.memory_space<vmem>>, vector<1x512xf32>
    %4 = vector.broadcast %3 : vector<1x512xf32> to vector<8x512xf32>
    %5 = arith.addf %2, %4 : vector<8x512xf32>
    %cst_5 = arith.constant 0.000000e+00 : f32
    %6 = vector.broadcast %cst_5 : f32 to vector<8x512xf32>
    %7 = arith.maximumf %5, %6 : vector<8x512xf32>
    %8 = arith.truncf %7 : vector<8x512xf32> to vector<8x512xbf16>
    %c0_6 = arith.constant 0 : index
    %c0_7 = arith.constant 0 : index
    %9 = vector.load %arg3[%c0_6, %c0_7] : memref<512x256xbf16, #tpu.memory_space<vmem>>, vector<512x256xbf16>
    %cst_8 = arith.constant dense<0.000000e+00> : vector<8x256xf32>
    %10 = tpu.matmul %8, %9, %cst_8 {dimension_numbers = #tpu.dot_dimension_numbers<[1], [0], [0], [1], [0, 0, 1, 1], [], []>} : vector<8x512xbf16>, vector<512x256xbf16>, vector<8x256xf32> -> vector<8x256xf32>
    %c0_9 = arith.constant 0 : index
    %c512 = arith.constant 512 : index
    %11 = vector.load %arg8[%c0_9, %c512] : memref<1x1280xf32, #tpu.memory_space<vmem>>, vector<1x256xf32>
    %12 = vector.broadcast %11 : vector<1x256xf32> to vector<8x256xf32>
    %13 = arith.addf %10, %12 : vector<8x256xf32>
    %cst_10 = arith.constant 0.000000e+00 : f32
    %14 = vector.broadcast %cst_10 : f32 to vector<8x256xf32>
    %15 = arith.maximumf %13, %14 : vector<8x256xf32>
    %16 = arith.truncf %15 : vector<8x256xf32> to vector<8x256xbf16>
    %c0_11 = arith.constant 0 : index
    %c0_12 = arith.constant 0 : index
    %17 = vector.load %arg4[%c0_11, %c0_12] : memref<256x128xbf16, #tpu.memory_space<vmem>>, vector<256x128xbf16>
    %cst_13 = arith.constant dense<0.000000e+00> : vector<8x128xf32>
    %18 = tpu.matmul %16, %17, %cst_13 {dimension_numbers = #tpu.dot_dimension_numbers<[1], [0], [0], [1], [0, 0, 1, 1], [], []>} : vector<8x256xbf16>, vector<256x128xbf16>, vector<8x128xf32> -> vector<8x128xf32>
    %c0_14 = arith.constant 0 : index
    %c768 = arith.constant 768 : index
    %19 = vector.load %arg8[%c0_14, %c768] : memref<1x1280xf32, #tpu.memory_space<vmem>>, vector<1x128xf32>
    %20 = vector.broadcast %19 : vector<1x128xf32> to vector<8x128xf32>
    %21 = arith.addf %18, %20 : vector<8x128xf32>
    %cst_15 = arith.constant 0.000000e+00 : f32
    %22 = vector.broadcast %cst_15 : f32 to vector<8x128xf32>
    %23 = arith.maximumf %21, %22 : vector<8x128xf32>
    %24 = arith.truncf %23 : vector<8x128xf32> to vector<8x128xbf16>
    %c0_16 = arith.constant 0 : index
    %c0_17 = arith.constant 0 : index
    %25 = vector.load %arg5[%c0_16, %c0_17] : memref<128x128xbf16, #tpu.memory_space<vmem>>, vector<128x128xbf16>
    %cst_18 = arith.constant dense<0.000000e+00> : vector<8x128xf32>
    %26 = tpu.matmul %24, %25, %cst_18 {dimension_numbers = #tpu.dot_dimension_numbers<[1], [0], [0], [1], [0, 0, 1, 1], [], []>} : vector<8x128xbf16>, vector<128x128xbf16>, vector<8x128xf32> -> vector<8x128xf32>
    %c0_19 = arith.constant 0 : index
    %c896 = arith.constant 896 : index
    %27 = vector.load %arg8[%c0_19, %c896] : memref<1x1280xf32, #tpu.memory_space<vmem>>, vector<1x128xf32>
    %28 = vector.broadcast %27 : vector<1x128xf32> to vector<8x128xf32>
    %29 = arith.addf %26, %28 : vector<8x128xf32>
    %cst_20 = arith.constant 0.000000e+00 : f32
    %30 = vector.broadcast %cst_20 : f32 to vector<8x128xf32>
    %31 = arith.maximumf %29, %30 : vector<8x128xf32>
    %32 = arith.truncf %31 : vector<8x128xf32> to vector<8x128xbf16>
    %c0_21 = arith.constant 0 : index
    %c0_22 = arith.constant 0 : index
    %33 = vector.load %arg6[%c0_21, %c0_22] : memref<128x128xbf16, #tpu.memory_space<vmem>>, vector<128x128xbf16>
    %cst_23 = arith.constant dense<0.000000e+00> : vector<8x128xf32>
    %34 = tpu.matmul %32, %33, %cst_23 {dimension_numbers = #tpu.dot_dimension_numbers<[1], [0], [0], [1], [0, 0, 1, 1], [], []>} : vector<8x128xbf16>, vector<128x128xbf16>, vector<8x128xf32> -> vector<8x128xf32>
    %c0_24 = arith.constant 0 : index
    %c1024 = arith.constant 1024 : index
    %35 = vector.load %arg8[%c0_24, %c1024] : memref<1x1280xf32, #tpu.memory_space<vmem>>, vector<1x128xf32>
    %36 = vector.broadcast %35 : vector<1x128xf32> to vector<8x128xf32>
    %37 = arith.addf %34, %36 : vector<8x128xf32>
    %cst_25 = arith.constant 0.000000e+00 : f32
    %38 = vector.broadcast %cst_25 : f32 to vector<8x128xf32>
    %39 = arith.maximumf %37, %38 : vector<8x128xf32>
    %40 = arith.truncf %39 : vector<8x128xf32> to vector<8x128xbf16>
    %c0_26 = arith.constant 0 : index
    %c0_27 = arith.constant 0 : index
    %41 = vector.load %arg7[%c0_26, %c0_27] : memref<128x1xbf16, #tpu.memory_space<vmem>>, vector<128x1xbf16>
    %cst_28 = arith.constant dense<0.000000e+00> : vector<8x1xf32>
    %42 = tpu.matmul %40, %41, %cst_28 {dimension_numbers = #tpu.dot_dimension_numbers<[1], [0], [0], [1], [0, 0, 1, 1], [], []>} : vector<8x128xbf16>, vector<128x1xbf16>, vector<8x1xf32> -> vector<8x1xf32>
    %c0_29 = arith.constant 0 : index
    %c1152 = arith.constant 1152 : index
    %43 = vector.load %arg8[%c0_29, %c1152] : memref<1x1280xf32, #tpu.memory_space<vmem>>, vector<1x1xf32>
    %44 = vector.broadcast %43 : vector<1x1xf32> to vector<8x1xf32>
    %45 = arith.addf %42, %44 : vector<8x1xf32>
    %c0_30 = arith.constant 0 : index
    %c0_31 = arith.constant 0 : index
    %46 = vector.load %arg9[%c0_30, %c0_31] : memref<8x1xf32, #tpu.memory_space<vmem>>, vector<8x1xf32>
    tpu.vector_store %arg9[%c0_30, %c0_31], %45 {strides = array<i32>} : memref<8x1xf32, #tpu.memory_space<vmem>>, vector<8x1xf32>,
    return
  }
  func.func @transform_0(%arg0: i32) -> (i32, i32) {
    %c0_i32 = arith.constant 0 : i32
    %c0_i32_0 = arith.constant 0 : i32
    return %arg0, %c0_i32 : i32, i32
  }
  func.func @transform_1(%arg0: i32) -> (i32, i32) {
    %c0_i32 = arith.constant 0 : i32
    %c0_i32_0 = arith.constant 0 : i32
    %c0_i32_1 = arith.constant 0 : i32
    return %c0_i32, %c0_i32_0 : i32, i32
  }
  func.func @transform_2(%arg0: i32) -> (i32, i32) {
    %c0_i32 = arith.constant 0 : i32
    %c0_i32_0 = arith.constant 0 : i32
    %c0_i32_1 = arith.constant 0 : i32
    return %c0_i32, %c0_i32_0 : i32, i32
  }
  func.func @transform_3(%arg0: i32) -> (i32, i32) {
    %c0_i32 = arith.constant 0 : i32
    %c0_i32_0 = arith.constant 0 : i32
    %c0_i32_1 = arith.constant 0 : i32
    return %c0_i32, %c0_i32_0 : i32, i32
  }
  func.func @transform_4(%arg0: i32) -> (i32, i32) {
    %c0_i32 = arith.constant 0 : i32
    %c0_i32_0 = arith.constant 0 : i32
    %c0_i32_1 = arith.constant 0 : i32
    return %c0_i32, %c0_i32_0 : i32, i32
  }
  func.func @transform_5(%arg0: i32) -> (i32, i32) {
    %c0_i32 = arith.constant 0 : i32
    %c0_i32_0 = arith.constant 0 : i32
    %c0_i32_1 = arith.constant 0 : i32
    return %c0_i32, %c0_i32_0 : i32, i32
  }
  func.func @transform_6(%arg0: i32) -> (i32, i32) {
    %c0_i32 = arith.constant 0 : i32
    %c0_i32_0 = arith.constant 0 : i32
    %c0_i32_1 = arith.constant 0 : i32
    return %c0_i32, %c0_i32_0 : i32, i32
  }
  func.func @transform_7(%arg0: i32) -> (i32, i32) {
    %c0_i32 = arith.constant 0 : i32
    %c0_i32_0 = arith.constant 0 : i32
    %c0_i32_1 = arith.constant 0 : i32
    return %c0_i32, %c0_i32_0 : i32, i32
  }
  func.func @transform_8(%arg0: i32) -> (i32, i32) {
    %c0_i32 = arith.constant 0 : i32
    %c0_i32_0 = arith.constant 0 : i32
    return %arg0, %c0_i32 : i32, i32
  }
}

</mosaic_0001>

<llo_original>
// kernel: tpu_custom_call.1
$region0: #{tpu_custom_call.1}
  #allocation0 [shape = 'u32[]', space=smem, size = 0x4, offset = 0x4, fixed_abs, tag = 'smem constant byte address 0x4 - core index']
  #allocation1 [shape = 'u32[144,128]{1,0:T(1,128)}', space=vmem, size = 0x12000, scoped, tag = 'internal scratch']
  %s0 = inlined_call_operand.vmem [shape: bf16[8,12], index: 0, kind: input, shape index: {}]
  %s1 = inlined_call_operand.hbm [shape: bf16[12,512], index: 1, kind: input, shape index: {}]
  %s2 = inlined_call_operand.hbm [shape: bf16[512,256], index: 2, kind: input, shape index: {}]
  %s3 = inlined_call_operand.hbm [shape: bf16[256,128], index: 3, kind: input, shape index: {}]
  %s4 = inlined_call_operand.vmem [shape: bf16[128,128], index: 4, kind: input, shape index: {}]
  %s5 = inlined_call_operand.hbm [shape: bf16[128,128], index: 5, kind: input, shape index: {}]
  %s6 = inlined_call_operand.vmem [shape: bf16[128,1], index: 6, kind: input, shape index: {}]
  %s7 = inlined_call_operand.vmem [shape: f32[1,1280], index: 7, kind: input, shape index: {}]
  %s8 = inlined_call_operand.vmem [shape: f32[8,1], index: 8, kind: output, shape index: {}]
  %s9 = sld [smem:[#allocation0]]
  $region58: #{tpu_custom_call.1} parent=0
    _
  %s11 = ssub.s32 1, %s9
  %s12 = scalar_select 0, %s11, %s9
  $region1: #{tpu_custom_call.1} parent=0
    #allocation2 [shape = 'u8[16384]{0}', space=vmem, size = 0x4000, scoped, tag = 'input window, operand 1, single buffered']
    #allocation3 [shape = 's32[1]{0}', space=sflag, size = 0x4, scoped, tag = 'scoped memory for tpu_custom_call.1']
    #allocation4 [shape = 'u8[262144]{0}', space=vmem, size = 0x40000, scoped, tag = 'input window, operand 2, single buffered']
    #allocation5 [shape = 's32[1]{0}', space=sflag, size = 0x4, scoped, tag = 'scoped memory for tpu_custom_call.1']
    #allocation6 [shape = 'u8[65536]{0}', space=vmem, size = 0x10000, scoped, tag = 'input window, operand 3, single buffered']
    #allocation7 [shape = 'u8[32768]{0}', space=vmem, size = 0x8000, scoped, tag = 'input window, operand 5, single buffered']
    #allocation8 [shape = 's32[1]{0}', space=sflag, size = 0x4, scoped, tag = 'scoped memory for tpu_custom_call.1']
    %13 = vsyncpa [#allocation3], 0
    %14 = vsyncpa [#allocation5], 0
    %15 = vsyncpa [#allocation8], 0
    // Predicated region
    $region2: #{tpu_custom_call.1} parent=1 // pred_check
      _
    $region3: #{tpu_custom_call.1} parent=1 // pred_check_branch
      %17 = sbr.rel (0) target = $region5
    $region4: #{tpu_custom_call.1} parent=1 // pred_region
      _
    $region5: #{tpu_custom_call.1} parent=1 // pred_fallthru
      _
    // Predicated region
    $region6: #{tpu_custom_call.1} parent=1 // pred_check
      _
    $region7: #{tpu_custom_call.1} parent=1 // pred_check_branch
      %19 = sbr.rel (0) target = $region9
    $region8: #{tpu_custom_call.1} parent=1 // pred_region
      %s21 = ssub.s32 512, 512
      %22 = vsyncadd [#allocation3], %s21
      %s23 = sshll.u32 [#allocation2], 4
      %s24 = int_to_ptr.vmem [resolvable:$true] %s23
      %29 = dma.hbm_to_vmem [thread:$0]  %s1, 512, %s24, [#allocation3], 256, 256, 16
    $region9: #{tpu_custom_call.1} parent=1 // pred_fallthru
      _
    // Predicated region
    $region10: #{tpu_custom_call.1} parent=1 // pred_check
      _
    $region11: #{tpu_custom_call.1} parent=1 // pred_check_branch
      %31 = sbr.rel (0) target = $region13
    $region12: #{tpu_custom_call.1} parent=1 // pred_region
      %s33 = ssub.s32 8192, 8192
      %34 = vsyncadd [#allocation5], %s33
      %s35 = sshll.u32 [#allocation4], 4
      %s36 = int_to_ptr.vmem [resolvable:$true] %s35
      %41 = dma.hbm_to_vmem [thread:$0]  %s2, 8192, %s36, [#allocation5], 128, 128, 8
    $region13: #{tpu_custom_call.1} parent=1 // pred_fallthru
      _
    // Predicated region
    $region14: #{tpu_custom_call.1} parent=1 // pred_check
      _
    $region15: #{tpu_custom_call.1} parent=1 // pred_check_branch
      %43 = sbr.rel (0) target = $region17
    $region16: #{tpu_custom_call.1} parent=1 // pred_region
      %s45 = ssub.s32 2048, 2048
      %46 = vsyncadd [#allocation5], %s45
      %s47 = sshll.u32 [#allocation6], 4
      %s48 = int_to_ptr.vmem [resolvable:$true] %s47
      %53 = dma.hbm_to_vmem [thread:$0]  %s3, 2048, %s48, [#allocation5], 64, 64, 4
    $region17: #{tpu_custom_call.1} parent=1 // pred_fallthru
      _
    // Predicated region
    $region18: #{tpu_custom_call.1} parent=1 // pred_check
      _
    $region19: #{tpu_custom_call.1} parent=1 // pred_check_branch
      %55 = sbr.rel (0) target = $region21
    $region20: #{tpu_custom_call.1} parent=1 // pred_region
      _
    $region21: #{tpu_custom_call.1} parent=1 // pred_fallthru
      _
    // Predicated region
    $region22: #{tpu_custom_call.1} parent=1 // pred_check
      _
    $region23: #{tpu_custom_call.1} parent=1 // pred_check_branch
      %57 = sbr.rel (0) target = $region25
    $region24: #{tpu_custom_call.1} parent=1 // pred_region
      %s59 = ssub.s32 1024, 1024
      %60 = vsyncadd [#allocation8], %s59
      %s61 = sshll.u32 [#allocation7], 4
      %s62 = int_to_ptr.vmem [resolvable:$true] %s61
      %67 = dma.hbm_to_vmem [thread:$0]  %s5, 1024, %s62, [#allocation8], 64, 64, 4
    $region25: #{tpu_custom_call.1} parent=1 // pred_fallthru
      _
    // Predicated region
    $region26: #{tpu_custom_call.1} parent=1 // pred_check
      _
    $region27: #{tpu_custom_call.1} parent=1 // pred_check_branch
      %69 = sbr.rel (0) target = $region29
    $region28: #{tpu_custom_call.1} parent=1 // pred_region
      _
    $region29: #{tpu_custom_call.1} parent=1 // pred_fallthru
      _
    // Predicated region
    $region30: #{tpu_custom_call.1} parent=1 // pred_check
      _
    $region31: #{tpu_custom_call.1} parent=1 // pred_check_branch
      %71 = sbr.rel (0) target = $region33
    $region32: #{tpu_custom_call.1} parent=1 // pred_region
      _
    $region33: #{tpu_custom_call.1} parent=1 // pred_fallthru
      _
    // Predicated region
    $region34: #{tpu_custom_call.1} parent=1 // pred_check
      _
    $region35: #{tpu_custom_call.1} parent=1 // pred_check_branch
      %73 = sbr.rel (0) target = $region37
    $region36: #{tpu_custom_call.1} parent=1 // pred_region
      %74 = dma.done [#allocation3], 512
    $region37: #{tpu_custom_call.1} parent=1 // pred_fallthru
      _
    // Predicated region
    $region38: #{tpu_custom_call.1} parent=1 // pred_check
      _
    $region39: #{tpu_custom_call.1} parent=1 // pred_check_branch
      %76 = sbr.rel (0) target = $region41
    $region40: #{tpu_custom_call.1} parent=1 // pred_region
      %77 = dma.done [#allocation5], 8192
    $region41: #{tpu_custom_call.1} parent=1 // pred_fallthru
      _
    // Predicated region
    $region42: #{tpu_custom_call.1} parent=1 // pred_check
      _
    $region43: #{tpu_custom_call.1} parent=1 // pred_check_branch
      %79 = sbr.rel (0) target = $region45
    $region44: #{tpu_custom_call.1} parent=1 // pred_region
      %80 = dma.done [#allocation5], 2048
    $region45: #{tpu_custom_call.1} parent=1 // pred_fallthru
      _
    // Predicated region
    $region46: #{tpu_custom_call.1} parent=1 // pred_check
      _
    $region47: #{tpu_custom_call.1} parent=1 // pred_check_branch
      %82 = sbr.rel (0) target = $region49
    $region48: #{tpu_custom_call.1} parent=1 // pred_region
      %83 = dma.done [#allocation8], 1024
    $region49: #{tpu_custom_call.1} parent=1 // pred_fallthru
      _
    %v85 = vld [vmem:[%s0] sm:$0xf]
    %v86 = vld [vmem:[#allocation2] sm:$0xff]
    %v87 = vld [vmem:[#allocation2 + $0x8] sm:$0xff]
    %v88 = vld [vmem:[#allocation2 + $0x10] sm:$0x33]
    %v89 = vld [vmem:[#allocation2 + $0x18] sm:$0x33]
    %v90 = vld [vmem:[%s7] sm:$0xf]
    %v92 = vlaneseq
    %v93 = vshrl.u32 %v92, 7
    %v94 = vsub.s32 0, %v93
    %v95 = vrot.slane %v90, %v94
    %v96 = vlaneseq
    %v97 = vshrl.u32 %v96, 7
    %v98 = vsub.s32 1, %v97
    %v99 = vrot.slane %v90, %v98
    %v100 = vlaneseq
    %v101 = vshrl.u32 %v100, 7
    %v102 = vsub.s32 2, %v101
    %v103 = vrot.slane %v90, %v102
    %v104 = vlaneseq
    %v105 = vshrl.u32 %v104, 7
    %v106 = vsub.s32 3, %v105
    %v107 = vrot.slane %v90, %v106
    %v116 = vunpack.c.l.b16 %v86
    %v117 = vunpack.c.h.b16 %v86
    %v118 = vunpack.c.l.b16 %v87
    %v119 = vunpack.c.h.b16 %v87
    %v120 = vunpack.c.l.b16 %v88
    %v121 = vunpack.c.h.b16 %v88
    %v122 = vunpack.c.l.b16 %v89
    %v123 = vunpack.c.h.b16 %v89
    %v124 = vpack.c.b16 %v120, %v116
    %v125 = vpack.c.b16 %v121, %v117
    %v126 = vpack.c.b16 %v122, %v118
    %v127 = vpack.c.b16 %v123, %v119
    %vm128 = vcmask 97280
    %v130 = vsel %vm128, %v85, 0
    %vm132 = vcmask 1045504
    %v134 = vsel %vm132, %v124, 0
    %v137 = vsel %vm132, %v125, 0
    %v140 = vsel %vm132, %v126, 0
    %v143 = vsel %vm132, %v127, 0
    %145 = vmatprep.subr.bf16.mxu0 %v137
    %146 = vmatpush1.bf16.msra.mxu0 %v134
    %147 = vmatprep.subr.bf16.mxu0 0
    %148 = vmatpush1.bf16.msra.mxu0 0
    %149 = vmatprep.subr.bf16.mxu0 0
    %150 = vmatpush1.bf16.msra.mxu0 0
    %151 = vmatprep.subr.bf16.mxu0 0
    %152 = vmatpush1.bf16.msra.mxu0 0
    %153 = vmatprep.subr.bf16.mxu0 0
    %154 = vmatpush1.bf16.msra.mxu0 0
    %155 = vmatprep.subr.bf16.mxu0 0
    %156 = vmatpush1.bf16.msra.mxu0 0
    %157 = vmatprep.subr.bf16.mxu0 0
    %158 = vmatpush1.bf16.msra.mxu0 0
    %159 = vmatprep.subr.bf16.mxu0 0
    %160 = vmatpush1.bf16.msra.mxu0 0
    %161 = vmatprep.subr.bf16.mxu0 0
    %162 = vmatpush1.bf16.msra.mxu0 0
    %163 = vmatprep.subr.bf16.mxu0 0
    %164 = vmatpush1.bf16.msra.mxu0 0
    %165 = vmatprep.subr.bf16.mxu0 0
    %166 = vmatpush1.bf16.msra.mxu0 0
    %167 = vmatprep.subr.bf16.mxu0 0
    %168 = vmatpush1.bf16.msra.mxu0 0
    %169 = vmatprep.subr.bf16.mxu0 0
    %170 = vmatpush1.bf16.msra.mxu0 0
    %171 = vmatprep.subr.bf16.mxu0 0
    %172 = vmatpush1.bf16.msra.mxu0 0
    %173 = vmatprep.subr.bf16.mxu0 0
    %174 = vmatpush1.bf16.msra.mxu0 0
    %175 = vmatprep.subr.bf16.mxu0 0
    %176 = vmatpush1.bf16.msra.mxu0 0
    %177 = vmatprep.mubr.bf16.mxu0 0
    %178 = vmatmul.mubr.bf16.gmra.mrb[0].mxu0 %v130
    %v179 = vpop.f32.mrb[0].mxu0
    %v180 = vadd.f32 %v95, %v179
    %v181 = vpop.f32.mrb[0].mxu0
    %v182 = vadd.f32 %v99, %v181
    %v183 = vpop.f32.mrb[0].mxu0
    %v184 = vpop.f32.mrb[0].mxu0
    %185 = vdwg.mxu0
    %186 = vmatprep.subr.bf16.mxu0 %v143
    %187 = vmatpush1.bf16.msra.mxu0 %v140
    %188 = vmatprep.subr.bf16.mxu0 0
    %189 = vmatpush1.bf16.msra.mxu0 0
    %190 = vmatprep.subr.bf16.mxu0 0
    %191 = vmatpush1.bf16.msra.mxu0 0
    %192 = vmatprep.subr.bf16.mxu0 0
    %193 = vmatpush1.bf16.msra.mxu0 0
    %194 = vmatprep.subr.bf16.mxu0 0
    %195 = vmatpush1.bf16.msra.mxu0 0
    %196 = vmatprep.subr.bf16.mxu0 0
    %197 = vmatpush1.bf16.msra.mxu0 0
    %198 = vmatprep.subr.bf16.mxu0 0
    %199 = vmatpush1.bf16.msra.mxu0 0
    %200 = vmatprep.subr.bf16.mxu0 0
    %201 = vmatpush1.bf16.msra.mxu0 0
    %202 = vmatprep.subr.bf16.mxu0 0
    %203 = vmatpush1.bf16.msra.mxu0 0
    %204 = vmatprep.subr.bf16.mxu0 0
    %205 = vmatpush1.bf16.msra.mxu0 0
    %206 = vmatprep.subr.bf16.mxu0 0
    %207 = vmatpush1.bf16.msra.mxu0 0
    %208 = vmatprep.subr.bf16.mxu0 0
    %209 = vmatpush1.bf16.msra.mxu0 0
    %210 = vmatprep.subr.bf16.mxu0 0
    %211 = vmatpush1.bf16.msra.mxu0 0
    %212 = vmatprep.subr.bf16.mxu0 0
    %213 = vmatpush1.bf16.msra.mxu0 0
    %214 = vmatprep.subr.bf16.mxu0 0
    %215 = vmatpush1.bf16.msra.mxu0 0
    %216 = vmatprep.subr.bf16.mxu0 0
    %217 = vmatpush1.bf16.msra.mxu0 0
    %218 = vmatprep.mubr.bf16.mxu0 0
    %219 = vmatmul.mubr.bf16.gmra.mrb[0].mxu0 %v130
    %v220 = vpop.f32.mrb[0].mxu0
    %v221 = vadd.f32 %v103, %v220
    %v222 = vpop.f32.mrb[0].mxu0
    %v223 = vadd.f32 %v107, %v222
    %v224 = vpop.f32.mrb[0].mxu0
    %v225 = vpop.f32.mrb[0].mxu0
    %226 = vdwg.mxu0
    %v227 = vmax.f32 %v180, 0.0
    %v228 = vmax.f32 %v182, 0.0
    %v229 = vmax.f32 %v221, 0.0
    %v230 = vmax.f32 %v223, 0.0
    %v231 = vpack.c.bf16 %v227, %v227
    %v232 = vpack.c.bf16 %v228, %v228
    %v233 = vpack.c.bf16 %v229, %v229
    %v234 = vpack.c.bf16 %v230, %v230
    %v235 = vld [vmem:[#allocation4] sm:$0xff]
    %v236 = vld [vmem:[#allocation4 + $0x8] sm:$0xff]
    %v237 = vld [vmem:[#allocation4 + $0x10] sm:$0xff]
    %v238 = vld [vmem:[#allocation4 + $0x18] sm:$0xff]
    %v239 = vld [vmem:[#allocation4 + $0x20] sm:$0xff]
    %v240 = vld [vmem:[#allocation4 + $0x28] sm:$0xff]
    %v241 = vld [vmem:[#allocation4 + $0x30] sm:$0xff]
    %v242 = vld [vmem:[#allocation4 + $0x38] sm:$0xff]
    %v243 = vld [vmem:[#allocation4 + $0x40] sm:$0xff]
    %v244 = vld [vmem:[#allocation4 + $0x48] sm:$0xff]
    %v245 = vld [vmem:[#allocation4 + $0x50] sm:$0xff]
    %v246 = vld [vmem:[#allocation4 + $0x58] sm:$0xff]
    %v247 = vld [vmem:[#allocation4 + $0x60] sm:$0xff]
    %v248 = vld [vmem:[#allocation4 + $0x68] sm:$0xff]
    %v249 = vld [vmem:[#allocation4 + $0x70] sm:$0xff]
    %v250 = vld [vmem:[#allocation4 + $0x78] sm:$0xff]
    %v251 = vld [vmem:[#allocation4 + $0x80] sm:$0xff]
    %v252 = vld [vmem:[#allocation4 + $0x88] sm:$0xff]
    %v253 = vld [vmem:[#allocation4 + $0x90] sm:$0xff]
    %v254 = vld [vmem:[#allocation4 + $0x98] sm:$0xff]
    %v255 = vld [vmem:[#allocation4 + $0xa0] sm:$0xff]
    %v256 = vld [vmem:[#allocation4 + $0xa8] sm:$0xff]
    %v257 = vld [vmem:[#allocation4 + $0xb0] sm:$0xff]
    %v258 = vld [vmem:[#allocation4 + $0xb8] sm:$0xff]
    %v259 = vld [vmem:[#allocation4 + $0xc0] sm:$0xff]
    %v260 = vld [vmem:[#allocation4 + $0xc8] sm:$0xff]
    %v261 = vld [vmem:[#allocation4 + $0xd0] sm:$0xff]
    %v262 = vld [vmem:[#allocation4 + $0xd8] sm:$0xff]
    %v263 = vld [vmem:[#allocation4 + $0xe0] sm:$0xff]
    %v264 = vld [vmem:[#allocation4 + $0xe8] sm:$0xff]
    %v265 = vld [vmem:[#allocation4 + $0xf0] sm:$0xff]
    %v266 = vld [vmem:[#allocation4 + $0xf8] sm:$0xff]
    %v267 = vld [vmem:[#allocation4 + $0x100] sm:$0xff]
    %v268 = vld [vmem:[#allocation4 + $0x108] sm:$0xff]
    %v269 = vld [vmem:[#allocation4 + $0x110] sm:$0xff]
    %v270 = vld [vmem:[#allocation4 + $0x118] sm:$0xff]
    %v271 = vld [vmem:[#allocation4 + $0x120] sm:$0xff]
    %v272 = vld [vmem:[#allocation4 + $0x128] sm:$0xff]
    %v273 = vld [vmem:[#allocation4 + $0x130] sm:$0xff]
    %v274 = vld [vmem:[#allocation4 + $0x138] sm:$0xff]
    %v275 = vld [vmem:[#allocation4 + $0x140] sm:$0xff]
    %v276 = vld [vmem:[#allocation4 + $0x148] sm:$0xff]
    %v277 = vld [vmem:[#allocation4 + $0x150] sm:$0xff]
    %v278 = vld [vmem:[#allocation4 + $0x158] sm:$0xff]
    %v279 = vld [vmem:[#allocation4 + $0x160] sm:$0xff]
    %v280 = vld [vmem:[#allocation4 + $0x168] sm:$0xff]
    %v281 = vld [vmem:[#allocation4 + $0x170] sm:$0xff]
    %v282 = vld [vmem:[#allocation4 + $0x178] sm:$0xff]
    %v283 = vld [vmem:[#allocation4 + $0x180] sm:$0xff]
    %v284 = vld [vmem:[#allocation4 + $0x188] sm:$0xff]
    %v285 = vld [vmem:[#allocation4 + $0x190] sm:$0xff]
    %v286 = vld [vmem:[#allocation4 + $0x198] sm:$0xff]
    %v287 = vld [vmem:[#allocation4 + $0x1a0] sm:$0xff]
    %v288 = vld [vmem:[#allocation4 + $0x1a8] sm:$0xff]
    %v289 = vld [vmem:[#allocation4 + $0x1b0] sm:$0xff]
    %v290 = vld [vmem:[#allocation4 + $0x1b8] sm:$0xff]
    %v291 = vld [vmem:[#allocation4 + $0x1c0] sm:$0xff]
    %v292 = vld [vmem:[#allocation4 + $0x1c8] sm:$0xff]
    %v293 = vld [vmem:[#allocation4 + $0x1d0] sm:$0xff]
    %v294 = vld [vmem:[#allocation4 + $0x1d8] sm:$0xff]
    %v295 = vld [vmem:[#allocation4 + $0x1e0] sm:$0xff]
    %v296 = vld [vmem:[#allocation4 + $0x1e8] sm:$0xff]
    %v297 = vld [vmem:[#allocation4 + $0x1f0] sm:$0xff]
    %v298 = vld [vmem:[#allocation4 + $0x1f8] sm:$0xff]
    %v299 = vld [vmem:[%s7 + $0x4] sm:$0x3]
    %v301 = vlaneseq
    %v302 = vshrl.u32 %v301, 7
    %v303 = vsub.s32 0, %v302
    %v304 = vrot.slane %v299, %v303
    %v305 = vlaneseq
    %v306 = vshrl.u32 %v305, 7
    %v307 = vsub.s32 1, %v306
    %v308 = vrot.slane %v299, %v307
    %v375 = vunpack.c.l.b16 %v235
    %v376 = vunpack.c.h.b16 %v235
    %v377 = vunpack.c.l.b16 %v236
    %v378 = vunpack.c.h.b16 %v236
    %v379 = vunpack.c.l.b16 %v237
    %v380 = vunpack.c.h.b16 %v237
    %v381 = vunpack.c.l.b16 %v238
    %v382 = vunpack.c.h.b16 %v238
    %v383 = vunpack.c.l.b16 %v239
    %v384 = vunpack.c.h.b16 %v239
    %v385 = vunpack.c.l.b16 %v240
    %v386 = vunpack.c.h.b16 %v240
    %v387 = vunpack.c.l.b16 %v241
    %v388 = vunpack.c.h.b16 %v241
    %v389 = vunpack.c.l.b16 %v242
    %v390 = vunpack.c.h.b16 %v242
    %v391 = vunpack.c.l.b16 %v243
    %v392 = vunpack.c.h.b16 %v243
    %v393 = vunpack.c.l.b16 %v244
    %v394 = vunpack.c.h.b16 %v244
    %v395 = vunpack.c.l.b16 %v245
    %v396 = vunpack.c.h.b16 %v245
    %v397 = vunpack.c.l.b16 %v246
    %v398 = vunpack.c.h.b16 %v246
    %v399 = vunpack.c.l.b16 %v247
    %v400 = vunpack.c.h.b16 %v247
    %v401 = vunpack.c.l.b16 %v248
    %v402 = vunpack.c.h.b16 %v248
    %v403 = vunpack.c.l.b16 %v249
    %v404 = vunpack.c.h.b16 %v249
    %v405 = vunpack.c.l.b16 %v250
    %v406 = vunpack.c.h.b16 %v250
    %v407 = vunpack.c.l.b16 %v251
    %v408 = vunpack.c.h.b16 %v251
    %v409 = vunpack.c.l.b16 %v252
    %v410 = vunpack.c.h.b16 %v252
    %v411 = vunpack.c.l.b16 %v253
    %v412 = vunpack.c.h.b16 %v253
    %v413 = vunpack.c.l.b16 %v254
    %v414 = vunpack.c.h.b16 %v254
    %v415 = vunpack.c.l.b16 %v255
    %v416 = vunpack.c.h.b16 %v255
    %v417 = vunpack.c.l.b16 %v256
    %v418 = vunpack.c.h.b16 %v256
    %v419 = vunpack.c.l.b16 %v257
    %v420 = vunpack.c.h.b16 %v257
    %v421 = vunpack.c.l.b16 %v258
    %v422 = vunpack.c.h.b16 %v258
    %v423 = vunpack.c.l.b16 %v259
    %v424 = vunpack.c.h.b16 %v259
    %v425 = vunpack.c.l.b16 %v260
    %v426 = vunpack.c.h.b16 %v260
    %v427 = vunpack.c.l.b16 %v261
    %v428 = vunpack.c.h.b16 %v261
    %v429 = vunpack.c.l.b16 %v262
    %v430 = vunpack.c.h.b16 %v262
    %v431 = vunpack.c.l.b16 %v263
    %v432 = vunpack.c.h.b16 %v263
    %v433 = vunpack.c.l.b16 %v264
    %v434 = vunpack.c.h.b16 %v264
    %v435 = vunpack.c.l.b16 %v265
    %v436 = vunpack.c.h.b16 %v265
    %v437 = vunpack.c.l.b16 %v266
    %v438 = vunpack.c.h.b16 %v266
    %v439 = vunpack.c.l.b16 %v267
    %v440 = vunpack.c.h.b16 %v267
    %v441 = vunpack.c.l.b16 %v268
    %v442 = vunpack.c.h.b16 %v268
    %v443 = vunpack.c.l.b16 %v269
    %v444 = vunpack.c.h.b16 %v269
    %v445 = vunpack.c.l.b16 %v270
    %v446 = vunpack.c.h.b16 %v270
    %v447 = vunpack.c.l.b16 %v271
    %v448 = vunpack.c.h.b16 %v271
    %v449 = vunpack.c.l.b16 %v272
    %v450 = vunpack.c.h.b16 %v272
    %v451 = vunpack.c.l.b16 %v273
    %v452 = vunpack.c.h.b16 %v273
    %v453 = vunpack.c.l.b16 %v274
    %v454 = vunpack.c.h.b16 %v274
    %v455 = vunpack.c.l.b16 %v275
    %v456 = vunpack.c.h.b16 %v275
    %v457 = vunpack.c.l.b16 %v276
    %v458 = vunpack.c.h.b16 %v276
    %v459 = vunpack.c.l.b16 %v277
    %v460 = vunpack.c.h.b16 %v277
    %v461 = vunpack.c.l.b16 %v278
    %v462 = vunpack.c.h.b16 %v278
    %v463 = vunpack.c.l.b16 %v279
    %v464 = vunpack.c.h.b16 %v279
    %v465 = vunpack.c.l.b16 %v280
    %v466 = vunpack.c.h.b16 %v280
    %v467 = vunpack.c.l.b16 %v281
    %v468 = vunpack.c.h.b16 %v281
    %v469 = vunpack.c.l.b16 %v282
    %v470 = vunpack.c.h.b16 %v282
    %v471 = vunpack.c.l.b16 %v283
    %v472 = vunpack.c.h.b16 %v283
    %v473 = vunpack.c.l.b16 %v284
    %v474 = vunpack.c.h.b16 %v284
    %v475 = vunpack.c.l.b16 %v285
    %v476 = vunpack.c.h.b16 %v285
    %v477 = vunpack.c.l.b16 %v286
    %v478 = vunpack.c.h.b16 %v286
    %v479 = vunpack.c.l.b16 %v287
    %v480 = vunpack.c.h.b16 %v287
    %v481 = vunpack.c.l.b16 %v288
    %v482 = vunpack.c.h.b16 %v288
    %v483 = vunpack.c.l.b16 %v289
    %v484 = vunpack.c.h.b16 %v289
    %v485 = vunpack.c.l.b16 %v290
    %v486 = vunpack.c.h.b16 %v290
    %v487 = vunpack.c.l.b16 %v291
    %v488 = vunpack.c.h.b16 %v291
    %v489 = vunpack.c.l.b16 %v292
    %v490 = vunpack.c.h.b16 %v292
    %v491 = vunpack.c.l.b16 %v293
    %v492 = vunpack.c.h.b16 %v293
    %v493 = vunpack.c.l.b16 %v294
    %v494 = vunpack.c.h.b16 %v294
    %v495 = vunpack.c.l.b16 %v295
    %v496 = vunpack.c.h.b16 %v295
    %v497 = vunpack.c.l.b16 %v296
    %v498 = vunpack.c.h.b16 %v296
    %v499 = vunpack.c.l.b16 %v297
    %v500 = vunpack.c.h.b16 %v297
    %v501 = vunpack.c.l.b16 %v298
    %v502 = vunpack.c.h.b16 %v298
    %v503 = vpack.c.b16 %v377, %v375
    %v504 = vpack.c.b16 %v378, %v376
    %v505 = vpack.c.b16 %v381, %v379
    %v506 = vpack.c.b16 %v382, %v380
    %v507 = vpack.c.b16 %v385, %v383
    %v508 = vpack.c.b16 %v386, %v384
    %v509 = vpack.c.b16 %v389, %v387
    %v510 = vpack.c.b16 %v390, %v388
    %v511 = vpack.c.b16 %v393, %v391
    %v512 = vpack.c.b16 %v394, %v392
    %v513 = vpack.c.b16 %v397, %v395
    %v514 = vpack.c.b16 %v398, %v396
    %v515 = vpack.c.b16 %v401, %v399
    %v516 = vpack.c.b16 %v402, %v400
    %v517 = vpack.c.b16 %v405, %v403
    %v518 = vpack.c.b16 %v406, %v404
    %v519 = vpack.c.b16 %v409, %v407
    %v520 = vpack.c.b16 %v410, %v408
    %v521 = vpack.c.b16 %v413, %v411
    %v522 = vpack.c.b16 %v414, %v412
    %v523 = vpack.c.b16 %v417, %v415
    %v524 = vpack.c.b16 %v418, %v416
    %v525 = vpack.c.b16 %v421, %v419
    %v526 = vpack.c.b16 %v422, %v420
    %v527 = vpack.c.b16 %v425, %v423
    %v528 = vpack.c.b16 %v426, %v424
    %v529 = vpack.c.b16 %v429, %v427
    %v530 = vpack.c.b16 %v430, %v428
    %v531 = vpack.c.b16 %v433, %v431
    %v532 = vpack.c.b16 %v434, %v432
    %v533 = vpack.c.b16 %v437, %v435
    %v534 = vpack.c.b16 %v438, %v436
    %v535 = vpack.c.b16 %v441, %v439
    %v536 = vpack.c.b16 %v442, %v440
    %v537 = vpack.c.b16 %v445, %v443
    %v538 = vpack.c.b16 %v446, %v444
    %v539 = vpack.c.b16 %v449, %v447
    %v540 = vpack.c.b16 %v450, %v448
    %v541 = vpack.c.b16 %v453, %v451
    %v542 = vpack.c.b16 %v454, %v452
    %v543 = vpack.c.b16 %v457, %v455
    %v544 = vpack.c.b16 %v458, %v456
    %v545 = vpack.c.b16 %v461, %v459
    %v546 = vpack.c.b16 %v462, %v460
    %v547 = vpack.c.b16 %v465, %v463
    %v548 = vpack.c.b16 %v466, %v464
    %v549 = vpack.c.b16 %v469, %v467
    %v550 = vpack.c.b16 %v470, %v468
    %v551 = vpack.c.b16 %v473, %v471
    %v552 = vpack.c.b16 %v474, %v472
    %v553 = vpack.c.b16 %v477, %v475
    %v554 = vpack.c.b16 %v478, %v476
    %v555 = vpack.c.b16 %v481, %v479
    %v556 = vpack.c.b16 %v482, %v480
    %v557 = vpack.c.b16 %v485, %v483
    %v558 = vpack.c.b16 %v486, %v484
    %v559 = vpack.c.b16 %v489, %v487
    %v560 = vpack.c.b16 %v490, %v488
    %v561 = vpack.c.b16 %v493, %v491
    %v562 = vpack.c.b16 %v494, %v492
    %v563 = vpack.c.b16 %v497, %v495
    %v564 = vpack.c.b16 %v498, %v496
    %v565 = vpack.c.b16 %v501, %v499
    %v566 = vpack.c.b16 %v502, %v500
    %631 = vmatprep.subr.bf16.mxu0 %v504
    %632 = vmatpush1.bf16.msra.mxu0 %v503
    %633 = vmatprep.subr.bf16.mxu0 %v506
    %634 = vmatpush1.bf16.msra.mxu0 %v505
    %635 = vmatprep.subr.bf16.mxu0 %v508
    %636 = vmatpush1.bf16.msra.mxu0 %v507
    %637 = vmatprep.subr.bf16.mxu0 %v510
    %638 = vmatpush1.bf16.msra.mxu0 %v509
    %639 = vmatprep.subr.bf16.mxu0 %v512
    %640 = vmatpush1.bf16.msra.mxu0 %v511
    %641 = vmatprep.subr.bf16.mxu0 %v514
    %642 = vmatpush1.bf16.msra.mxu0 %v513
    %643 = vmatprep.subr.bf16.mxu0 %v516
    %644 = vmatpush1.bf16.msra.mxu0 %v515
    %645 = vmatprep.subr.bf16.mxu0 %v518
    %646 = vmatpush1.bf16.msra.mxu0 %v517
    %647 = vmatprep.subr.bf16.mxu0 %v520
    %648 = vmatpush1.bf16.msra.mxu0 %v519
    %649 = vmatprep.subr.bf16.mxu0 %v522
    %650 = vmatpush1.bf16.msra.mxu0 %v521
    %651 = vmatprep.subr.bf16.mxu0 %v524
    %652 = vmatpush1.bf16.msra.mxu0 %v523
    %653 = vmatprep.subr.bf16.mxu0 %v526
    %654 = vmatpush1.bf16.msra.mxu0 %v525
    %655 = vmatprep.subr.bf16.mxu0 %v528
    %656 = vmatpush1.bf16.msra.mxu0 %v527
    %657 = vmatprep.subr.bf16.mxu0 %v530
    %658 = vmatpush1.bf16.msra.mxu0 %v529
    %659 = vmatprep.subr.bf16.mxu0 %v532
    %660 = vmatpush1.bf16.msra.mxu0 %v531
    %661 = vmatprep.subr.bf16.mxu0 %v534
    %662 = vmatpush1.bf16.msra.mxu0 %v533
    %663 = vmatprep.mubr.bf16.mxu0 %v232
    %664 = vmatmul.mubr.bf16.gmra.mrb[0].mxu0 %v231
    %v665 = vpop.f32.mrb[0].mxu0
    %v666 = vadd.f32 %v304, %v665
    %v667 = vpop.f32.mrb[0].mxu0
    %v668 = vadd.f32 %v308, %v667
    %v669 = vpop.f32.mrb[0].mxu0
    %v670 = vpop.f32.mrb[0].mxu0
    %671 = vdwg.mxu0
    %672 = vmatprep.subr.bf16.mxu0 %v536
    %673 = vmatpush1.bf16.msra.mxu0 %v535
    %674 = vmatprep.subr.bf16.mxu0 %v538
    %675 = vmatpush1.bf16.msra.mxu0 %v537
    %676 = vmatprep.subr.bf16.mxu0 %v540
    %677 = vmatpush1.bf16.msra.mxu0 %v539
    %678 = vmatprep.subr.bf16.mxu0 %v542
    %679 = vmatpush1.bf16.msra.mxu0 %v541
    %680 = vmatprep.subr.bf16.mxu0 %v544
    %681 = vmatpush1.bf16.msra.mxu0 %v543
    %682 = vmatprep.subr.bf16.mxu0 %v546
    %683 = vmatpush1.bf16.msra.mxu0 %v545
    %684 = vmatprep.subr.bf16.mxu0 %v548
    %685 = vmatpush1.bf16.msra.mxu0 %v547
    %686 = vmatprep.subr.bf16.mxu0 %v550
    %687 = vmatpush1.bf16.msra.mxu0 %v549
    %688 = vmatprep.subr.bf16.mxu0 %v552
    %689 = vmatpush1.bf16.msra.mxu0 %v551
    %690 = vmatprep.subr.bf16.mxu0 %v554
    %691 = vmatpush1.bf16.msra.mxu0 %v553
    %692 = vmatprep.subr.bf16.mxu0 %v556
    %693 = vmatpush1.bf16.msra.mxu0 %v555
    %694 = vmatprep.subr.bf16.mxu0 %v558
    %695 = vmatpush1.bf16.msra.mxu0 %v557
    %696 = vmatprep.subr.bf16.mxu0 %v560
    %697 = vmatpush1.bf16.msra.mxu0 %v559
    %698 = vmatprep.subr.bf16.mxu0 %v562
    %699 = vmatpush1.bf16.msra.mxu0 %v561
    %700 = vmatprep.subr.bf16.mxu0 %v564
    %701 = vmatpush1.bf16.msra.mxu0 %v563
    %702 = vmatprep.subr.bf16.mxu0 %v566
    %703 = vmatpush1.bf16.msra.mxu0 %v565
    %704 = vmatprep.mubr.bf16.mxu0 %v234
    %705 = vmatmul.mubr.bf16.gmra.mrb[0].mxu0 %v233
    %v706 = vpop.f32.mrb[0].mxu0
    %v707 = vadd.f32 %v666, %v706
    %v708 = vpop.f32.mrb[0].mxu0
    %v709 = vadd.f32 %v668, %v708
    %v710 = vpop.f32.mrb[0].mxu0
    %v711 = vpop.f32.mrb[0].mxu0
    %712 = vdwg.mxu0
    %v713 = vmax.f32 %v707, 0.0
    %v714 = vmax.f32 %v709, 0.0
    %v715 = vpack.c.bf16 %v713, %v713
    %v716 = vpack.c.bf16 %v714, %v714
    %v717 = vld [vmem:[#allocation6] sm:$0xf]
    %v718 = vld [vmem:[#allocation6 + $0x4] sm:$0xf]
    %v719 = vld [vmem:[#allocation6 + $0x8] sm:$0xf]
    %v720 = vld [vmem:[#allocation6 + $0xc] sm:$0xf]
    %v721 = vld [vmem:[#allocation6 + $0x10] sm:$0xf]
    %v722 = vld [vmem:[#allocation6 + $0x14] sm:$0xf]
    %v723 = vld [vmem:[#allocation6 + $0x18] sm:$0xf]
    %v724 = vld [vmem:[#allocation6 + $0x1c] sm:$0xf]
    %v725 = vld [vmem:[#allocation6 + $0x20] sm:$0xf]
    %v726 = vld [vmem:[#allocation6 + $0x24] sm:$0xf]
    %v727 = vld [vmem:[#allocation6 + $0x28] sm:$0xf]
    %v728 = vld [vmem:[#allocation6 + $0x2c] sm:$0xf]
    %v729 = vld [vmem:[#allocation6 + $0x30] sm:$0xf]
    %v730 = vld [vmem:[#allocation6 + $0x34] sm:$0xf]
    %v731 = vld [vmem:[#allocation6 + $0x38] sm:$0xf]
    %v732 = vld [vmem:[#allocation6 + $0x3c] sm:$0xf]
    %v733 = vld [vmem:[#allocation6 + $0x40] sm:$0xf]
    %v734 = vld [vmem:[#allocation6 + $0x44] sm:$0xf]
    %v735 = vld [vmem:[#allocation6 + $0x48] sm:$0xf]
    %v736 = vld [vmem:[#allocation6 + $0x4c] sm:$0xf]
    %v737 = vld [vmem:[#allocation6 + $0x50] sm:$0xf]
    %v738 = vld [vmem:[#allocation6 + $0x54] sm:$0xf]
    %v739 = vld [vmem:[#allocation6 + $0x58] sm:$0xf]
    %v740 = vld [vmem:[#allocation6 + $0x5c] sm:$0xf]
    %v741 = vld [vmem:[#allocation6 + $0x60] sm:$0xf]
    %v742 = vld [vmem:[#allocation6 + $0x64] sm:$0xf]
    %v743 = vld [vmem:[#allocation6 + $0x68] sm:$0xf]
    %v744 = vld [vmem:[#allocation6 + $0x6c] sm:$0xf]
    %v745 = vld [vmem:[#allocation6 + $0x70] sm:$0xf]
    %v746 = vld [vmem:[#allocation6 + $0x74] sm:$0xf]
    %v747 = vld [vmem:[#allocation6 + $0x78] sm:$0xf]
    %v748 = vld [vmem:[#allocation6 + $0x7c] sm:$0xf]
    %v749 = vld [vmem:[%s7 + $0x6] sm:$0x1]
    %v751 = vlaneseq
    %v752 = vshrl.u32 %v751, 7
    %v753 = vsub.s32 0, %v752
    %v754 = vrot.slane %v749, %v753
    %v788 = vunpack.c.l.b16 %v717
    %v789 = vunpack.c.l.b16 %v718
    %v790 = vunpack.c.l.b16 %v719
    %v791 = vunpack.c.l.b16 %v720
    %v792 = vunpack.c.l.b16 %v721
    %v793 = vunpack.c.l.b16 %v722
    %v794 = vunpack.c.l.b16 %v723
    %v795 = vunpack.c.l.b16 %v724
    %v796 = vunpack.c.l.b16 %v725
    %v797 = vunpack.c.l.b16 %v726
    %v798 = vunpack.c.l.b16 %v727
    %v799 = vunpack.c.l.b16 %v728
    %v800 = vunpack.c.l.b16 %v729
    %v801 = vunpack.c.l.b16 %v730
    %v802 = vunpack.c.l.b16 %v731
    %v803 = vunpack.c.l.b16 %v732
    %v804 = vunpack.c.l.b16 %v733
    %v805 = vunpack.c.l.b16 %v734
    %v806 = vunpack.c.l.b16 %v735
    %v807 = vunpack.c.l.b16 %v736
    %v808 = vunpack.c.l.b16 %v737
    %v809 = vunpack.c.l.b16 %v738
    %v810 = vunpack.c.l.b16 %v739
    %v811 = vunpack.c.l.b16 %v740
    %v812 = vunpack.c.l.b16 %v741
    %v813 = vunpack.c.l.b16 %v742
    %v814 = vunpack.c.l.b16 %v743
    %v815 = vunpack.c.l.b16 %v744
    %v816 = vunpack.c.l.b16 %v745
    %v817 = vunpack.c.l.b16 %v746
    %v818 = vunpack.c.l.b16 %v747
    %v819 = vunpack.c.l.b16 %v748
    %v820 = vpack.c.b16 %v789, %v788
    %v821 = vpack.c.b16 %v791, %v790
    %v822 = vpack.c.b16 %v793, %v792
    %v823 = vpack.c.b16 %v795, %v794
    %v824 = vpack.c.b16 %v797, %v796
    %v825 = vpack.c.b16 %v799, %v798
    %v826 = vpack.c.b16 %v801, %v800
    %v827 = vpack.c.b16 %v803, %v802
    %v828 = vpack.c.b16 %v805, %v804
    %v829 = vpack.c.b16 %v807, %v806
    %v830 = vpack.c.b16 %v809, %v808
    %v831 = vpack.c.b16 %v811, %v810
    %v832 = vpack.c.b16 %v813, %v812
    %v833 = vpack.c.b16 %v815, %v814
    %v834 = vpack.c.b16 %v817, %v816
    %v835 = vpack.c.b16 %v819, %v818
    %852 = vmatprep.subr.bf16.mxu0 0
    %853 = vmatpush1.bf16.msra.mxu0 %v820
    %854 = vmatprep.subr.bf16.mxu0 0
    %855 = vmatpush1.bf16.msra.mxu0 %v821
    %856 = vmatprep.subr.bf16.mxu0 0
    %857 = vmatpush1.bf16.msra.mxu0 %v822
    %858 = vmatprep.subr.bf16.mxu0 0
    %859 = vmatpush1.bf16.msra.mxu0 %v823
    %860 = vmatprep.subr.bf16.mxu0 0
    %861 = vmatpush1.bf16.msra.mxu0 %v824
    %862 = vmatprep.subr.bf16.mxu0 0
    %863 = vmatpush1.bf16.msra.mxu0 %v825
    %864 = vmatprep.subr.bf16.mxu0 0
    %865 = vmatpush1.bf16.msra.mxu0 %v826
    %866 = vmatprep.subr.bf16.mxu0 0
    %867 = vmatpush1.bf16.msra.mxu0 %v827
    %868 = vmatprep.subr.bf16.mxu0 0
    %869 = vmatpush1.bf16.msra.mxu0 %v828
    %870 = vmatprep.subr.bf16.mxu0 0
    %871 = vmatpush1.bf16.msra.mxu0 %v829
    %872 = vmatprep.subr.bf16.mxu0 0
    %873 = vmatpush1.bf16.msra.mxu0 %v830
    %874 = vmatprep.subr.bf16.mxu0 0
    %875 = vmatpush1.bf16.msra.mxu0 %v831
    %876 = vmatprep.subr.bf16.mxu0 0
    %877 = vmatpush1.bf16.msra.mxu0 %v832
    %878 = vmatprep.subr.bf16.mxu0 0
    %879 = vmatpush1.bf16.msra.mxu0 %v833
    %880 = vmatprep.subr.bf16.mxu0 0
    %881 = vmatpush1.bf16.msra.mxu0 %v834
    %882 = vmatprep.subr.bf16.mxu0 0
    %883 = vmatpush1.bf16.msra.mxu0 %v835
    %884 = vmatprep.mubr.bf16.mxu0 %v716
    %885 = vmatmul.mubr.bf16.gmra.mrb[0].mxu0 %v715
    %v886 = vpop.f32.mrb[0].mxu0
    %v887 = vadd.f32 %v754, %v886
    %v888 = vpop.f32.mrb[0].mxu0
    %v889 = vpop.f32.mrb[0].mxu0
    %v890 = vpop.f32.mrb[0].mxu0
    %891 = vdwg.mxu0
    %v892 = vmax.f32 %v887, 0.0
    %v893 = vpack.c.bf16 %v892, %v892
    %v894 = vld [vmem:[%s4] sm:$0xf]
    %v895 = vld [vmem:[%s4 + $0x4] sm:$0xf]
    %v896 = vld [vmem:[%s4 + $0x8] sm:$0xf]
    %v897 = vld [vmem:[%s4 + $0xc] sm:$0xf]
    %v898 = vld [vmem:[%s4 + $0x10] sm:$0xf]
    %v899 = vld [vmem:[%s4 + $0x14] sm:$0xf]
    %v900 = vld [vmem:[%s4 + $0x18] sm:$0xf]
    %v901 = vld [vmem:[%s4 + $0x1c] sm:$0xf]
    %v902 = vld [vmem:[%s4 + $0x20] sm:$0xf]
    %v903 = vld [vmem:[%s4 + $0x24] sm:$0xf]
    %v904 = vld [vmem:[%s4 + $0x28] sm:$0xf]
    %v905 = vld [vmem:[%s4 + $0x2c] sm:$0xf]
    %v906 = vld [vmem:[%s4 + $0x30] sm:$0xf]
    %v907 = vld [vmem:[%s4 + $0x34] sm:$0xf]
    %v908 = vld [vmem:[%s4 + $0x38] sm:$0xf]
    %v909 = vld [vmem:[%s4 + $0x3c] sm:$0xf]
    %v910 = vld [vmem:[%s7 + $0x7] sm:$0x1]
    %v912 = vlaneseq
    %v913 = vshrl.u32 %v912, 7
    %v914 = vsub.s32 0, %v913
    %v915 = vrot.slane %v910, %v914
    %v933 = vunpack.c.l.b16 %v894
    %v934 = vunpack.c.l.b16 %v895
    %v935 = vunpack.c.l.b16 %v896
    %v936 = vunpack.c.l.b16 %v897
    %v937 = vunpack.c.l.b16 %v898
    %v938 = vunpack.c.l.b16 %v899
    %v939 = vunpack.c.l.b16 %v900
    %v940 = vunpack.c.l.b16 %v901
    %v941 = vunpack.c.l.b16 %v902
    %v942 = vunpack.c.l.b16 %v903
    %v943 = vunpack.c.l.b16 %v904
    %v944 = vunpack.c.l.b16 %v905
    %v945 = vunpack.c.l.b16 %v906
    %v946 = vunpack.c.l.b16 %v907
    %v947 = vunpack.c.l.b16 %v908
    %v948 = vunpack.c.l.b16 %v909
    %v949 = vpack.c.b16 %v934, %v933
    %v950 = vpack.c.b16 %v936, %v935
    %v951 = vpack.c.b16 %v938, %v937
    %v952 = vpack.c.b16 %v940, %v939
    %v953 = vpack.c.b16 %v942, %v941
    %v954 = vpack.c.b16 %v944, %v943
    %v955 = vpack.c.b16 %v946, %v945
    %v956 = vpack.c.b16 %v948, %v947
    %965 = vmatprep.subr.bf16.mxu0 0
    %966 = vmatpush1.bf16.msra.mxu0 %v949
    %967 = vmatprep.subr.bf16.mxu0 0
    %968 = vmatpush1.bf16.msra.mxu0 %v950
    %969 = vmatprep.subr.bf16.mxu0 0
    %970 = vmatpush1.bf16.msra.mxu0 %v951
    %971 = vmatprep.subr.bf16.mxu0 0
    %972 = vmatpush1.bf16.msra.mxu0 %v952
    %973 = vmatprep.subr.bf16.mxu0 0
    %974 = vmatpush1.bf16.msra.mxu0 %v953
    %975 = vmatprep.subr.bf16.mxu0 0
    %976 = vmatpush1.bf16.msra.mxu0 %v954
    %977 = vmatprep.subr.bf16.mxu0 0
    %978 = vmatpush1.bf16.msra.mxu0 %v955
    %979 = vmatprep.subr.bf16.mxu0 0
    %980 = vmatpush1.bf16.msra.mxu0 %v956
    %981 = vmatprep.subr.bf16.mxu0 0
    %982 = vmatpush1.bf16.msra.mxu0 0
    %983 = vmatprep.subr.bf16.mxu0 0
    %984 = vmatpush1.bf16.msra.mxu0 0
    %985 = vmatprep.subr.bf16.mxu0 0
    %986 = vmatpush1.bf16.msra.mxu0 0
    %987 = vmatprep.subr.bf16.mxu0 0
    %988 = vmatpush1.bf16.msra.mxu0 0
    %989 = vmatprep.subr.bf16.mxu0 0
    %990 = vmatpush1.bf16.msra.mxu0 0
    %991 = vmatprep.subr.bf16.mxu0 0
    %992 = vmatpush1.bf16.msra.mxu0 0
    %993 = vmatprep.subr.bf16.mxu0 0
    %994 = vmatpush1.bf16.msra.mxu0 0
    %995 = vmatprep.subr.bf16.mxu0 0
    %996 = vmatpush1.bf16.msra.mxu0 0
    %997 = vmatprep.mubr.bf16.mxu0 0
    %998 = vmatmul.mubr.bf16.gmra.mrb[0].mxu0 %v893
    %v999 = vpop.f32.mrb[0].mxu0
    %v1000 = vadd.f32 %v915, %v999
    %v1001 = vpop.f32.mrb[0].mxu0
    %v1002 = vpop.f32.mrb[0].mxu0
    %v1003 = vpop.f32.mrb[0].mxu0
    %1004 = vdwg.mxu0
    %v1005 = vmax.f32 %v1000, 0.0
    %v1006 = vpack.c.bf16 %v1005, %v1005
    %v1007 = vld [vmem:[#allocation7] sm:$0xf]
    %v1008 = vld [vmem:[#allocation7 + $0x4] sm:$0xf]
    %v1009 = vld [vmem:[#allocation7 + $0x8] sm:$0xf]
    %v1010 = vld [vmem:[#allocation7 + $0xc] sm:$0xf]
    %v1011 = vld [vmem:[#allocation7 + $0x10] sm:$0xf]
    %v1012 = vld [vmem:[#allocation7 + $0x14] sm:$0xf]
    %v1013 = vld [vmem:[#allocation7 + $0x18] sm:$0xf]
    %v1014 = vld [vmem:[#allocation7 + $0x1c] sm:$0xf]
    %v1015 = vld [vmem:[#allocation7 + $0x20] sm:$0xf]
    %v1016 = vld [vmem:[#allocation7 + $0x24] sm:$0xf]
    %v1017 = vld [vmem:[#allocation7 + $0x28] sm:$0xf]
    %v1018 = vld [vmem:[#allocation7 + $0x2c] sm:$0xf]
    %v1019 = vld [vmem:[#allocation7 + $0x30] sm:$0xf]
    %v1020 = vld [vmem:[#allocation7 + $0x34] sm:$0xf]
    %v1021 = vld [vmem:[#allocation7 + $0x38] sm:$0xf]
    %v1022 = vld [vmem:[#allocation7 + $0x3c] sm:$0xf]
    %v1023 = vld [vmem:[%s7 + $0x8] sm:$0x1]
    %v1025 = vlaneseq
    %v1026 = vshrl.u32 %v1025, 7
    %v1027 = vsub.s32 0, %v1026
    %v1028 = vrot.slane %v1023, %v1027
    %v1046 = vunpack.c.l.b16 %v1007
    %v1047 = vunpack.c.l.b16 %v1008
    %v1048 = vunpack.c.l.b16 %v1009
    %v1049 = vunpack.c.l.b16 %v1010
    %v1050 = vunpack.c.l.b16 %v1011
    %v1051 = vunpack.c.l.b16 %v1012
    %v1052 = vunpack.c.l.b16 %v1013
    %v1053 = vunpack.c.l.b16 %v1014
    %v1054 = vunpack.c.l.b16 %v1015
    %v1055 = vunpack.c.l.b16 %v1016
    %v1056 = vunpack.c.l.b16 %v1017
    %v1057 = vunpack.c.l.b16 %v1018
    %v1058 = vunpack.c.l.b16 %v1019
    %v1059 = vunpack.c.l.b16 %v1020
    %v1060 = vunpack.c.l.b16 %v1021
    %v1061 = vunpack.c.l.b16 %v1022
    %v1062 = vpack.c.b16 %v1047, %v1046
    %v1063 = vpack.c.b16 %v1049, %v1048
    %v1064 = vpack.c.b16 %v1051, %v1050
    %v1065 = vpack.c.b16 %v1053, %v1052
    %v1066 = vpack.c.b16 %v1055, %v1054
    %v1067 = vpack.c.b16 %v1057, %v1056
    %v1068 = vpack.c.b16 %v1059, %v1058
    %v1069 = vpack.c.b16 %v1061, %v1060
    %1078 = vmatprep.subr.bf16.mxu0 0
    %1079 = vmatpush1.bf16.msra.mxu0 %v1062
    %1080 = vmatprep.subr.bf16.mxu0 0
    %1081 = vmatpush1.bf16.msra.mxu0 %v1063
    %1082 = vmatprep.subr.bf16.mxu0 0
    %1083 = vmatpush1.bf16.msra.mxu0 %v1064
    %1084 = vmatprep.subr.bf16.mxu0 0
    %1085 = vmatpush1.bf16.msra.mxu0 %v1065
    %1086 = vmatprep.subr.bf16.mxu0 0
    %1087 = vmatpush1.bf16.msra.mxu0 %v1066
    %1088 = vmatprep.subr.bf16.mxu0 0
    %1089 = vmatpush1.bf16.msra.mxu0 %v1067
    %1090 = vmatprep.subr.bf16.mxu0 0
    %1091 = vmatpush1.bf16.msra.mxu0 %v1068
    %1092 = vmatprep.subr.bf16.mxu0 0
    %1093 = vmatpush1.bf16.msra.mxu0 %v1069
    %1094 = vmatprep.subr.bf16.mxu0 0
    %1095 = vmatpush1.bf16.msra.mxu0 0
    %1096 = vmatprep.subr.bf16.mxu0 0
    %1097 = vmatpush1.bf16.msra.mxu0 0
    %1098 = vmatprep.subr.bf16.mxu0 0
    %1099 = vmatpush1.bf16.msra.mxu0 0
    %1100 = vmatprep.subr.bf16.mxu0 0
    %1101 = vmatpush1.bf16.msra.mxu0 0
    %1102 = vmatprep.subr.bf16.mxu0 0
    %1103 = vmatpush1.bf16.msra.mxu0 0
    %1104 = vmatprep.subr.bf16.mxu0 0
    %1105 = vmatpush1.bf16.msra.mxu0 0
    %1106 = vmatprep.subr.bf16.mxu0 0
    %1107 = vmatpush1.bf16.msra.mxu0 0
    %1108 = vmatprep.subr.bf16.mxu0 0
    %1109 = vmatpush1.bf16.msra.mxu0 0
    %1110 = vmatprep.mubr.bf16.mxu0 0
    %1111 = vmatmul.mubr.bf16.gmra.mrb[0].mxu0 %v1006
    %v1112 = vpop.f32.mrb[0].mxu0
    %v1113 = vadd.f32 %v1028, %v1112
    %v1114 = vpop.f32.mrb[0].mxu0
    %v1115 = vpop.f32.mrb[0].mxu0
    %v1116 = vpop.f32.mrb[0].mxu0
    %1117 = vdwg.mxu0
    %v1118 = vmax.f32 %v1113, 0.0
    %v1119 = vpack.c.bf16 %v1118, %v1118
    %v1120 = vld [vmem:[%s6] sm:$0xf]
    %v1121 = vld [vmem:[%s6 + $0x4] sm:$0xf]
    %v1122 = vld [vmem:[%s6 + $0x8] sm:$0xf]
    %v1123 = vld [vmem:[%s6 + $0xc] sm:$0xf]
    %v1124 = vld [vmem:[%s6 + $0x10] sm:$0xf]
    %v1125 = vld [vmem:[%s6 + $0x14] sm:$0xf]
    %v1126 = vld [vmem:[%s6 + $0x18] sm:$0xf]
    %v1127 = vld [vmem:[%s6 + $0x1c] sm:$0xf]
    %v1128 = vld [vmem:[%s6 + $0x20] sm:$0xf]
    %v1129 = vld [vmem:[%s6 + $0x24] sm:$0xf]
    %v1130 = vld [vmem:[%s6 + $0x28] sm:$0xf]
    %v1131 = vld [vmem:[%s6 + $0x2c] sm:$0xf]
    %v1132 = vld [vmem:[%s6 + $0x30] sm:$0xf]
    %v1133 = vld [vmem:[%s6 + $0x34] sm:$0xf]
    %v1134 = vld [vmem:[%s6 + $0x38] sm:$0xf]
    %v1135 = vld [vmem:[%s6 + $0x3c] sm:$0xf]
    %v1136 = vld [vmem:[%s7 + $0x9] sm:$0x1]
    %v1138 = vlaneseq
    %v1139 = vshrl.u32 %v1138, 7
    %v1140 = vsub.s32 0, %v1139
    %v1141 = vrot.slane %v1136, %v1140
    %v1159 = vunpack.c.l.b16 %v1120
    %v1160 = vunpack.c.l.b16 %v1121
    %v1161 = vunpack.c.l.b16 %v1122
    %v1162 = vunpack.c.l.b16 %v1123
    %v1163 = vunpack.c.l.b16 %v1124
    %v1164 = vunpack.c.l.b16 %v1125
    %v1165 = vunpack.c.l.b16 %v1126
    %v1166 = vunpack.c.l.b16 %v1127
    %v1167 = vunpack.c.l.b16 %v1128
    %v1168 = vunpack.c.l.b16 %v1129
    %v1169 = vunpack.c.l.b16 %v1130
    %v1170 = vunpack.c.l.b16 %v1131
    %v1171 = vunpack.c.l.b16 %v1132
    %v1172 = vunpack.c.l.b16 %v1133
    %v1173 = vunpack.c.l.b16 %v1134
    %v1174 = vunpack.c.l.b16 %v1135
    %v1175 = vpack.c.b16 %v1160, %v1159
    %v1176 = vpack.c.b16 %v1162, %v1161
    %v1177 = vpack.c.b16 %v1164, %v1163
    %v1178 = vpack.c.b16 %v1166, %v1165
    %v1179 = vpack.c.b16 %v1168, %v1167
    %v1180 = vpack.c.b16 %v1170, %v1169
    %v1181 = vpack.c.b16 %v1172, %v1171
    %v1182 = vpack.c.b16 %v1174, %v1173
    %1191 = vmatprep.subr.bf16.mxu0 0
    %1192 = vmatpush1.bf16.msra.mxu0 %v1175
    %1193 = vmatprep.subr.bf16.mxu0 0
    %1194 = vmatpush1.bf16.msra.mxu0 %v1176
    %1195 = vmatprep.subr.bf16.mxu0 0
    %1196 = vmatpush1.bf16.msra.mxu0 %v1177
    %1197 = vmatprep.subr.bf16.mxu0 0
    %1198 = vmatpush1.bf16.msra.mxu0 %v1178
    %1199 = vmatprep.subr.bf16.mxu0 0
    %1200 = vmatpush1.bf16.msra.mxu0 %v1179
    %1201 = vmatprep.subr.bf16.mxu0 0
    %1202 = vmatpush1.bf16.msra.mxu0 %v1180
    %1203 = vmatprep.subr.bf16.mxu0 0
    %1204 = vmatpush1.bf16.msra.mxu0 %v1181
    %1205 = vmatprep.subr.bf16.mxu0 0
    %1206 = vmatpush1.bf16.msra.mxu0 %v1182
    %1207 = vmatprep.subr.bf16.mxu0 0
    %1208 = vmatpush1.bf16.msra.mxu0 0
    %1209 = vmatprep.subr.bf16.mxu0 0
    %1210 = vmatpush1.bf16.msra.mxu0 0
    %1211 = vmatprep.subr.bf16.mxu0 0
    %1212 = vmatpush1.bf16.msra.mxu0 0
    %1213 = vmatprep.subr.bf16.mxu0 0
    %1214 = vmatpush1.bf16.msra.mxu0 0
    %1215 = vmatprep.subr.bf16.mxu0 0
    %1216 = vmatpush1.bf16.msra.mxu0 0
    %1217 = vmatprep.subr.bf16.mxu0 0
    %1218 = vmatpush1.bf16.msra.mxu0 0
    %1219 = vmatprep.subr.bf16.mxu0 0
    %1220 = vmatpush1.bf16.msra.mxu0 0
    %1221 = vmatprep.subr.bf16.mxu0 0
    %1222 = vmatpush1.bf16.msra.mxu0 0
    %1223 = vmatprep.mubr.bf16.mxu0 0
    %1224 = vmatmul.mubr.bf16.gmra.mrb[0].mxu0 %v1119
    %v1225 = vpop.f32.mrb[0].mxu0
    %v1226 = vadd.f32 %v1141, %v1225
    %v1227 = vpop.f32.mrb[0].mxu0
    %v1228 = vpop.f32.mrb[0].mxu0
    %v1229 = vpop.f32.mrb[0].mxu0
    %1230 = vdwg.mxu0
    %vm1231 = vcmask 7168
    %1232 = vst.msk [vmem:[%s8] sm:$0xff] %vm1231, %v1226
    // Predicated region
    $region50: #{tpu_custom_call.1} parent=1 // pred_check
      _
    $region51: #{tpu_custom_call.1} parent=1 // pred_check_branch
      %1234 = sbr.rel (0) target = $region53
    $region52: #{tpu_custom_call.1} parent=1 // pred_region
      _
    $region53: #{tpu_custom_call.1} parent=1 // pred_fallthru
      _
    // Predicated region
    $region54: #{tpu_custom_call.1} parent=1 // pred_check
      _
    $region55: #{tpu_custom_call.1} parent=1 // pred_check_branch
      %1236 = sbr.rel (0) target = $region57
    $region56: #{tpu_custom_call.1} parent=1 // pred_region
      _
    $region57: #{tpu_custom_call.1} parent=1 // pred_fallthru
      _
    %1237 = vsyncpa [#allocation3], 1
    %1238 = vsyncpa [#allocation5], 1
    %1239 = vsyncpa [#allocation8], 1

</llo_original>
